<compile_context>
chip_gen: v6e
topology: v6e:2x2x1
jax: 0.10.0
libtpu: 0.0.40
codegen_flags: <defaults>
</compile_context>

<pallas_src>
import jax
import jax.numpy as jnp
from jax.experimental import pallas as pl
from jax.experimental.pallas import tpu as pltpu

IN_PLANES = 1792        # efficient_baseline.in_planes
NUM_CLASSES = 40        # default num_classes
BN_EPS = 1e-5           # nn.BatchNorm1d default eps

_V5E_DEFAULT_SCOPED_VMEM = 16 * 1024 * 1024   # tightest default across chips
_MAX_VMEM_LIMIT = 64 * 1024 * 1024            # v7x per-TC physical VMEM


def _fused_head_kernel(x_ref, w_ref, b_ref, out_ref):
    # x_ref:   (bt, C)  f32/bf16  global_feat row tile
    # w_ref:   (C, N)   bf16      BN-folded classifier weight (pre-transposed)
    # b_ref:   (1, N)   f32       BN-folded bias
    # out_ref: (bt, N)  f32       logits
    x = x_ref[...].astype(jnp.bfloat16)          # in-vreg cast; no-op if bf16 input
    acc = jnp.dot(x, w_ref[...], preferred_element_type=jnp.float32)
    out_ref[...] = acc + b_ref[...]              # f32 bias add (VPU)


def fuse_bn_into_classifier(gamma, beta, running_mean, running_var,
                            classifier_w):
    """Fold inference BatchNorm1d into the bias-free Linear (exact algebra).

    Returns (w_fused: (C, N) bf16, b_fused: (1, N) f32).  Constant-folded /
    hoisted when params are static under jit.
    """
    s = gamma * jax.lax.rsqrt(running_var + BN_EPS)       # (C,)
    wt = classifier_w.T                                    # (C, N); Linear: x @ W.T
    w_fused = (wt * s[:, None]).astype(jnp.bfloat16)       # (C, N)
    b_fused = ((beta - running_mean * s) @ wt)             # (N,)
    b_fused = b_fused.reshape(1, -1).astype(jnp.float32)
    return w_fused, b_fused


def efficient_baseline_head(global_feat, w_fused, b_fused, *, block_b=512):
    """Pallas bnneck head.  Returns (cls_score, global_feat) like PyTorch."""
    B, C = global_feat.shape
    assert C == IN_PLANES
    N = w_fused.shape[1]

    # ---- row tiling ------------------------------------------------------
    # Small batch: one full block (launch/DMA-overhead bound anyway).
    # Large batch: >= 2 grid steps so v7x's two TCs both get work; tiles are
    # multiples of 8 rows capped at block_b; ragged last tile is handled by
    # Pallas (out-of-bounds output rows are dropped and each output row only
    # depends on its own input row).
    if B <= 64:
        bt = B
    else:
        half = -(-B // 2)                       # ceil(B / 2)
        bt = min(block_b, ((half + 7) // 8) * 8)
    grid = (pl.cdiv(B, bt),)

    # ---- VMEM guard (only matters for very large row tiles on v5e) --------
    x_itemsize = jnp.dtype(global_feat.dtype).itemsize
    vmem_needed = (2 * bt * C * x_itemsize      # double-buffered x tiles
                   + 2 * C * N * 2              # bf16 fused weight
                   + 2 * 1 * N * 4              # bias
                   + 2 * bt * N * 4)            # output tiles
    cp_kwargs = dict(dimension_semantics=("parallel",))
    if vmem_needed > int(0.85 * _V5E_DEFAULT_SCOPED_VMEM):
        cp_kwargs["vmem_limit_bytes"] = min(int(vmem_needed * 1.5),
                                            _MAX_VMEM_LIMIT)

    # ---- cost hint so XLA can overlap this tiny call with its neighbours --
    cost = pl.CostEstimate(
        flops=2 * B * C * N,
        transcendentals=0,
        bytes_accessed=B * C * x_itemsize + C * N * 2 + N * 4 + B * N * 4,
    )

    cls_score = pl.pallas_call(
        _fused_head_kernel,
        out_shape=jax.ShapeDtypeStruct((B, N), jnp.float32),
        grid_spec=pl.GridSpec(
            grid=grid,
            in_specs=[
                pl.BlockSpec((bt, C), lambda i: (i, 0)),   # x row tile
                # Constant blocks (same index every step) -> Pallas keeps them
                # resident; they are not re-DMA'd per grid step.
                pl.BlockSpec((C, N), lambda i: (0, 0)),    # fused W (bf16)
                pl.BlockSpec((1, N), lambda i: (0, 0)),    # fused bias
            ],
            out_specs=pl.BlockSpec((bt, N), lambda i: (i, 0)),
        ),
        compiler_params=pltpu.CompilerParams(**cp_kwargs),
        cost_estimate=cost,
    )(global_feat, w_fused, b_fused)

    return cls_score, global_feat


def init_params(key):
    """Deterministic parameter init mirroring the PyTorch module's init."""
    k_gamma, k_w = jax.random.split(key, 2)
    # weights_init_kaiming for BatchNorm1d: weight ~ N(1, 0.02), bias = 0
    gamma = 1.0 + 0.02 * jax.random.normal(k_gamma, (IN_PLANES,), jnp.float32)
    beta = jnp.zeros((IN_PLANES,), jnp.float32)
    running_mean = jnp.zeros((IN_PLANES,), jnp.float32)
    running_var = jnp.ones((IN_PLANES,), jnp.float32)
    # weights_init_classifier for Linear: weight ~ N(0, 0.001), no bias
    classifier_w = 0.001 * jax.random.normal(
        k_w, (NUM_CLASSES, IN_PLANES), jnp.float32)
    return gamma, beta, running_mean, running_var, classifier_w


def _reference_head(global_feat, gamma, beta, rmean, rvar, classifier_w):
    """Pure-JAX f32 reference (un-fused BN + Linear) for tolerance check."""
    s = gamma / jnp.sqrt(rvar + BN_EPS)
    feat = (global_feat - rmean) * s + beta
    return feat @ classifier_w.T


if __name__ == "__main__":
    key = jax.random.PRNGKey(0)
    k_params, k_feat, k_feat2, k_m, k_v = jax.random.split(key, 5)
    gamma, beta, rmean, rvar, w = init_params(k_params)

    # Simulate non-trivial trained running stats so the BN fold is exercised
    # (at PyTorch init the fold is trivially zero-bias).
    rmean = 0.1 * jax.random.normal(k_m, (IN_PLANES,), jnp.float32)
    rvar = 1.0 + 0.1 * jax.random.uniform(k_v, (IN_PLANES,), jnp.float32)

    # Fold BN into the classifier once (hoisted/constant under jit).
    w_fused, b_fused = fuse_bn_into_classifier(gamma, beta, rmean, rvar, w)

    head = jax.jit(efficient_baseline_head)

    # --- check 1: small batch (single block path), like backbone inference ---
    batch = 8
    global_feat = jax.random.normal(k_feat, (batch, IN_PLANES), jnp.float32)
    cls_score, feat_out = head(global_feat, w_fused, b_fused)
    jax.block_until_ready((cls_score, feat_out))
    assert cls_score.shape == (batch, NUM_CLASSES)
    assert feat_out.shape == (batch, IN_PLANES)
    ref = _reference_head(global_feat, gamma, beta, rmean, rvar, w)
    assert jnp.allclose(cls_score, ref, rtol=2e-2, atol=2e-3), (
        float(jnp.max(jnp.abs(cls_score - ref))))
    assert bool(jnp.all(feat_out == global_feat))

    # --- check 2: larger batch (>=2 grid steps, ragged last tile) ------------
    batch2 = 100
    global_feat2 = jax.random.normal(k_feat2, (batch2, IN_PLANES), jnp.float32)
    cls_score2, feat_out2 = head(global_feat2, w_fused, b_fused)
    jax.block_until_ready((cls_score2, feat_out2))
    assert cls_score2.shape == (batch2, NUM_CLASSES)
    ref2 = _reference_head(global_feat2, gamma, beta, rmean, rvar, w)
    assert jnp.allclose(cls_score2, ref2, rtol=2e-2, atol=2e-3), (
        float(jnp.max(jnp.abs(cls_score2 - ref2))))
    assert bool(jnp.all(feat_out2 == global_feat2))

    print("KERNEL_OK")
</pallas_src>

<mosaic_0001>
module attributes {stable_mosaic.version = 11 : i64} {
  func.func @_fused_head_kernel(%arg0: i32, %arg1: memref<8x1792xf32, #tpu.memory_space<vmem>>, %arg2: memref<1792x40xbf16, #tpu.memory_space<vmem>>, %arg3: memref<1x40xf32, #tpu.memory_space<vmem>>, %arg4: memref<8x40xf32, #tpu.memory_space<vmem>>) attributes {dimension_semantics = [#tpu.dimension_semantics<parallel>], iteration_bounds = array<i64: 1>, scalar_prefetch = 0 : i64, scratch_operands = 0 : i64, tpu.core_type = #tpu.core_type<tc>, window_params = [{transform_indices = @transform_0, window_bounds = array<i64: 8, 1792>}, {pipeline_mode = #tpu.pipeline_mode<synchronous>, transform_indices = @transform_1, window_bounds = array<i64: 1792, 40>}, {pipeline_mode = #tpu.pipeline_mode<synchronous>, transform_indices = @transform_2, window_bounds = array<i64: 1, 40>}, {transform_indices = @transform_3, window_bounds = array<i64: 8, 40>}]} {
    %c0 = arith.constant 0 : index
    %c0_0 = arith.constant 0 : index
    %0 = vector.load %arg1[%c0, %c0_0] : memref<8x1792xf32, #tpu.memory_space<vmem>>, vector<8x1792xf32>
    %1 = arith.truncf %0 : vector<8x1792xf32> to vector<8x1792xbf16>
    %c0_1 = arith.constant 0 : index
    %c0_2 = arith.constant 0 : index
    %2 = vector.load %arg2[%c0_1, %c0_2] : memref<1792x40xbf16, #tpu.memory_space<vmem>>, vector<1792x40xbf16>
    %cst = arith.constant dense<0.000000e+00> : vector<8x40xf32>
    %3 = tpu.matmul %1, %2, %cst {dimension_numbers = #tpu.dot_dimension_numbers<[1], [0], [0], [1], [0, 0, 1, 1], [], []>} : vector<8x1792xbf16>, vector<1792x40xbf16>, vector<8x40xf32> -> vector<8x40xf32>
    %c0_3 = arith.constant 0 : index
    %c0_4 = arith.constant 0 : index
    %4 = vector.load %arg3[%c0_3, %c0_4] : memref<1x40xf32, #tpu.memory_space<vmem>>, vector<1x40xf32>
    %5 = vector.broadcast %4 : vector<1x40xf32> to vector<8x40xf32>
    %6 = arith.addf %3, %5 : vector<8x40xf32>
    %c0_5 = arith.constant 0 : index
    %c0_6 = arith.constant 0 : index
    %7 = vector.load %arg4[%c0_5, %c0_6] : memref<8x40xf32, #tpu.memory_space<vmem>>, vector<8x40xf32>
    tpu.vector_store %arg4[%c0_5, %c0_6], %6 {strides = array<i32>} : memref<8x40xf32, #tpu.memory_space<vmem>>, vector<8x40xf32>,
    return
  }
  func.func @transform_0(%arg0: i32) -> (i32, i32) {
    %c0_i32 = arith.constant 0 : i32
    %c0_i32_0 = arith.constant 0 : i32
    return %arg0, %c0_i32 : i32, i32
  }
  func.func @transform_1(%arg0: i32) -> (i32, i32) {
    %c0_i32 = arith.constant 0 : i32
    %c0_i32_0 = arith.constant 0 : i32
    %c0_i32_1 = arith.constant 0 : i32
    return %c0_i32, %c0_i32_0 : i32, i32
  }
  func.func @transform_2(%arg0: i32) -> (i32, i32) {
    %c0_i32 = arith.constant 0 : i32
    %c0_i32_0 = arith.constant 0 : i32
    %c0_i32_1 = arith.constant 0 : i32
    return %c0_i32, %c0_i32_0 : i32, i32
  }
  func.func @transform_3(%arg0: i32) -> (i32, i32) {
    %c0_i32 = arith.constant 0 : i32
    %c0_i32_0 = arith.constant 0 : i32
    return %arg0, %c0_i32 : i32, i32
  }
}

</mosaic_0001>

<llo_original>
// kernel: efficient_baseline_head.1
$region0: #{efficient_baseline_head.1}
  #allocation0 [shape = 'u32[]', space=smem, size = 0x4, offset = 0x4, fixed_abs, tag = 'smem constant byte address 0x4 - core index']
  #allocation1 [shape = 'u32[144,128]{1,0:T(1,128)}', space=vmem, size = 0x12000, scoped, tag = 'internal scratch']
  %s0 = inlined_call_operand.vmem [shape: f32[8,1792], index: 0, kind: input, shape index: {}]
  %s1 = inlined_call_operand.vmem [shape: bf16[1792,40], index: 1, kind: input, shape index: {}]
  %s2 = inlined_call_operand.vmem [shape: f32[1,40], index: 2, kind: input, shape index: {}]
  %s3 = inlined_call_operand.hbm [shape: f32[8,40], index: 3, kind: output, shape index: {}]
  %s4 = sld [smem:[#allocation0]]
  $region22: #{efficient_baseline_head.1} parent=0
    _
  %s6 = ssub.s32 1, %s4
  %s7 = scalar_select 0, %s6, %s4
  $region1: #{efficient_baseline_head.1} parent=0
    #allocation2 [shape = 'u8[4096]{0}', space=vmem, size = 0x1000, scoped, tag = 'output window, operand 0, single buffered']
    #allocation3 [shape = 's32[1]{0}', space=sflag, size = 0x4, scoped, tag = 'scoped memory for efficient_baseline_head.1']
    %8 = vsyncpa [#allocation3], 0
    // Predicated region
    $region2: #{efficient_baseline_head.1} parent=1 // pred_check
      _
    $region3: #{efficient_baseline_head.1} parent=1 // pred_check_branch
      %10 = sbr.rel (0) target = $region5
    $region4: #{efficient_baseline_head.1} parent=1 // pred_region
      _
    $region5: #{efficient_baseline_head.1} parent=1 // pred_fallthru
      _
    // Predicated region
    $region6: #{efficient_baseline_head.1} parent=1 // pred_check
      _
    $region7: #{efficient_baseline_head.1} parent=1 // pred_check_branch
      %12 = sbr.rel (0) target = $region9
    $region8: #{efficient_baseline_head.1} parent=1 // pred_region
      _
    $region9: #{efficient_baseline_head.1} parent=1 // pred_fallthru
      _
    // Predicated region
    $region10: #{efficient_baseline_head.1} parent=1 // pred_check
      _
    $region11: #{efficient_baseline_head.1} parent=1 // pred_check_branch
      %14 = sbr.rel (0) target = $region13
    $region12: #{efficient_baseline_head.1} parent=1 // pred_region
      _
    $region13: #{efficient_baseline_head.1} parent=1 // pred_fallthru
      _
    %v16 = vld [vmem:[%s0] sm:$0xff]
    %v17 = vld [vmem:[%s0 + $0x8] sm:$0xff]
    %v18 = vld [vmem:[%s0 + $0x10] sm:$0xff]
    %v19 = vld [vmem:[%s0 + $0x18] sm:$0xff]
    %v20 = vld [vmem:[%s0 + $0x20] sm:$0xff]
    %v21 = vld [vmem:[%s0 + $0x28] sm:$0xff]
    %v22 = vld [vmem:[%s0 + $0x30] sm:$0xff]
    %v23 = vld [vmem:[%s0 + $0x38] sm:$0xff]
    %v24 = vld [vmem:[%s0 + $0x40] sm:$0xff]
    %v25 = vld [vmem:[%s0 + $0x48] sm:$0xff]
    %v26 = vld [vmem:[%s0 + $0x50] sm:$0xff]
    %v27 = vld [vmem:[%s0 + $0x58] sm:$0xff]
    %v28 = vld [vmem:[%s0 + $0x60] sm:$0xff]
    %v29 = vld [vmem:[%s0 + $0x68] sm:$0xff]
    %v30 = vpack.c.bf16 %v16, %v16
    %v31 = vpack.c.bf16 %v17, %v17
    %v32 = vpack.c.bf16 %v18, %v18
    %v33 = vpack.c.bf16 %v19, %v19
    %v34 = vpack.c.bf16 %v20, %v20
    %v35 = vpack.c.bf16 %v21, %v21
    %v36 = vpack.c.bf16 %v22, %v22
    %v37 = vpack.c.bf16 %v23, %v23
    %v38 = vpack.c.bf16 %v24, %v24
    %v39 = vpack.c.bf16 %v25, %v25
    %v40 = vpack.c.bf16 %v26, %v26
    %v41 = vpack.c.bf16 %v27, %v27
    %v42 = vpack.c.bf16 %v28, %v28
    %v43 = vpack.c.bf16 %v29, %v29
    %v44 = vld [vmem:[%s1] sm:$0xf]
    %v45 = vld [vmem:[%s1 + $0x4] sm:$0xf]
    %v46 = vld [vmem:[%s1 + $0x8] sm:$0xf]
    %v47 = vld [vmem:[%s1 + $0xc] sm:$0xf]
    %v48 = vld [vmem:[%s1 + $0x10] sm:$0xf]
    %v49 = vld [vmem:[%s1 + $0x14] sm:$0xf]
    %v50 = vld [vmem:[%s1 + $0x18] sm:$0xf]
    %v51 = vld [vmem:[%s1 + $0x1c] sm:$0xf]
    %v52 = vld [vmem:[%s1 + $0x20] sm:$0xf]
    %v53 = vld [vmem:[%s1 + $0x24] sm:$0xf]
    %v54 = vld [vmem:[%s1 + $0x28] sm:$0xf]
    %v55 = vld [vmem:[%s1 + $0x2c] sm:$0xf]
    %v56 = vld [vmem:[%s1 + $0x30] sm:$0xf]
    %v57 = vld [vmem:[%s1 + $0x34] sm:$0xf]
    %v58 = vld [vmem:[%s1 + $0x38] sm:$0xf]
    %v59 = vld [vmem:[%s1 + $0x3c] sm:$0xf]
    %v60 = vld [vmem:[%s1 + $0x40] sm:$0xf]
    %v61 = vld [vmem:[%s1 + $0x44] sm:$0xf]
    %v62 = vld [vmem:[%s1 + $0x48] sm:$0xf]
    %v63 = vld [vmem:[%s1 + $0x4c] sm:$0xf]
    %v64 = vld [vmem:[%s1 + $0x50] sm:$0xf]
    %v65 = vld [vmem:[%s1 + $0x54] sm:$0xf]
    %v66 = vld [vmem:[%s1 + $0x58] sm:$0xf]
    %v67 = vld [vmem:[%s1 + $0x5c] sm:$0xf]
    %v68 = vld [vmem:[%s1 + $0x60] sm:$0xf]
    %v69 = vld [vmem:[%s1 + $0x64] sm:$0xf]
    %v70 = vld [vmem:[%s1 + $0x68] sm:$0xf]
    %v71 = vld [vmem:[%s1 + $0x6c] sm:$0xf]
    %v72 = vld [vmem:[%s1 + $0x70] sm:$0xf]
    %v73 = vld [vmem:[%s1 + $0x74] sm:$0xf]
    %v74 = vld [vmem:[%s1 + $0x78] sm:$0xf]
    %v75 = vld [vmem:[%s1 + $0x7c] sm:$0xf]
    %v76 = vld [vmem:[%s1 + $0x80] sm:$0xf]
    %v77 = vld [vmem:[%s1 + $0x84] sm:$0xf]
    %v78 = vld [vmem:[%s1 + $0x88] sm:$0xf]
    %v79 = vld [vmem:[%s1 + $0x8c] sm:$0xf]
    %v80 = vld [vmem:[%s1 + $0x90] sm:$0xf]
    %v81 = vld [vmem:[%s1 + $0x94] sm:$0xf]
    %v82 = vld [vmem:[%s1 + $0x98] sm:$0xf]
    %v83 = vld [vmem:[%s1 + $0x9c] sm:$0xf]
    %v84 = vld [vmem:[%s1 + $0xa0] sm:$0xf]
    %v85 = vld [vmem:[%s1 + $0xa4] sm:$0xf]
    %v86 = vld [vmem:[%s1 + $0xa8] sm:$0xf]
    %v87 = vld [vmem:[%s1 + $0xac] sm:$0xf]
    %v88 = vld [vmem:[%s1 + $0xb0] sm:$0xf]
    %v89 = vld [vmem:[%s1 + $0xb4] sm:$0xf]
    %v90 = vld [vmem:[%s1 + $0xb8] sm:$0xf]
    %v91 = vld [vmem:[%s1 + $0xbc] sm:$0xf]
    %v92 = vld [vmem:[%s1 + $0xc0] sm:$0xf]
    %v93 = vld [vmem:[%s1 + $0xc4] sm:$0xf]
    %v94 = vld [vmem:[%s1 + $0xc8] sm:$0xf]
    %v95 = vld [vmem:[%s1 + $0xcc] sm:$0xf]
    %v96 = vld [vmem:[%s1 + $0xd0] sm:$0xf]
    %v97 = vld [vmem:[%s1 + $0xd4] sm:$0xf]
    %v98 = vld [vmem:[%s1 + $0xd8] sm:$0xf]
    %v99 = vld [vmem:[%s1 + $0xdc] sm:$0xf]
    %v100 = vld [vmem:[%s1 + $0xe0] sm:$0xf]
    %v101 = vld [vmem:[%s1 + $0xe4] sm:$0xf]
    %v102 = vld [vmem:[%s1 + $0xe8] sm:$0xf]
    %v103 = vld [vmem:[%s1 + $0xec] sm:$0xf]
    %v104 = vld [vmem:[%s1 + $0xf0] sm:$0xf]
    %v105 = vld [vmem:[%s1 + $0xf4] sm:$0xf]
    %v106 = vld [vmem:[%s1 + $0xf8] sm:$0xf]
    %v107 = vld [vmem:[%s1 + $0xfc] sm:$0xf]
    %v108 = vld [vmem:[%s1 + $0x100] sm:$0xf]
    %v109 = vld [vmem:[%s1 + $0x104] sm:$0xf]
    %v110 = vld [vmem:[%s1 + $0x108] sm:$0xf]
    %v111 = vld [vmem:[%s1 + $0x10c] sm:$0xf]
    %v112 = vld [vmem:[%s1 + $0x110] sm:$0xf]
    %v113 = vld [vmem:[%s1 + $0x114] sm:$0xf]
    %v114 = vld [vmem:[%s1 + $0x118] sm:$0xf]
    %v115 = vld [vmem:[%s1 + $0x11c] sm:$0xf]
    %v116 = vld [vmem:[%s1 + $0x120] sm:$0xf]
    %v117 = vld [vmem:[%s1 + $0x124] sm:$0xf]
    %v118 = vld [vmem:[%s1 + $0x128] sm:$0xf]
    %v119 = vld [vmem:[%s1 + $0x12c] sm:$0xf]
    %v120 = vld [vmem:[%s1 + $0x130] sm:$0xf]
    %v121 = vld [vmem:[%s1 + $0x134] sm:$0xf]
    %v122 = vld [vmem:[%s1 + $0x138] sm:$0xf]
    %v123 = vld [vmem:[%s1 + $0x13c] sm:$0xf]
    %v124 = vld [vmem:[%s1 + $0x140] sm:$0xf]
    %v125 = vld [vmem:[%s1 + $0x144] sm:$0xf]
    %v126 = vld [vmem:[%s1 + $0x148] sm:$0xf]
    %v127 = vld [vmem:[%s1 + $0x14c] sm:$0xf]
    %v128 = vld [vmem:[%s1 + $0x150] sm:$0xf]
    %v129 = vld [vmem:[%s1 + $0x154] sm:$0xf]
    %v130 = vld [vmem:[%s1 + $0x158] sm:$0xf]
    %v131 = vld [vmem:[%s1 + $0x15c] sm:$0xf]
    %v132 = vld [vmem:[%s1 + $0x160] sm:$0xf]
    %v133 = vld [vmem:[%s1 + $0x164] sm:$0xf]
    %v134 = vld [vmem:[%s1 + $0x168] sm:$0xf]
    %v135 = vld [vmem:[%s1 + $0x16c] sm:$0xf]
    %v136 = vld [vmem:[%s1 + $0x170] sm:$0xf]
    %v137 = vld [vmem:[%s1 + $0x174] sm:$0xf]
    %v138 = vld [vmem:[%s1 + $0x178] sm:$0xf]
    %v139 = vld [vmem:[%s1 + $0x17c] sm:$0xf]
    %v140 = vld [vmem:[%s1 + $0x180] sm:$0xf]
    %v141 = vld [vmem:[%s1 + $0x184] sm:$0xf]
    %v142 = vld [vmem:[%s1 + $0x188] sm:$0xf]
    %v143 = vld [vmem:[%s1 + $0x18c] sm:$0xf]
    %v144 = vld [vmem:[%s1 + $0x190] sm:$0xf]
    %v145 = vld [vmem:[%s1 + $0x194] sm:$0xf]
    %v146 = vld [vmem:[%s1 + $0x198] sm:$0xf]
    %v147 = vld [vmem:[%s1 + $0x19c] sm:$0xf]
    %v148 = vld [vmem:[%s1 + $0x1a0] sm:$0xf]
    %v149 = vld [vmem:[%s1 + $0x1a4] sm:$0xf]
    %v150 = vld [vmem:[%s1 + $0x1a8] sm:$0xf]
    %v151 = vld [vmem:[%s1 + $0x1ac] sm:$0xf]
    %v152 = vld [vmem:[%s1 + $0x1b0] sm:$0xf]
    %v153 = vld [vmem:[%s1 + $0x1b4] sm:$0xf]
    %v154 = vld [vmem:[%s1 + $0x1b8] sm:$0xf]
    %v155 = vld [vmem:[%s1 + $0x1bc] sm:$0xf]
    %v156 = vld [vmem:[%s1 + $0x1c0] sm:$0xf]
    %v157 = vld [vmem:[%s1 + $0x1c4] sm:$0xf]
    %v158 = vld [vmem:[%s1 + $0x1c8] sm:$0xf]
    %v159 = vld [vmem:[%s1 + $0x1cc] sm:$0xf]
    %v160 = vld [vmem:[%s1 + $0x1d0] sm:$0xf]
    %v161 = vld [vmem:[%s1 + $0x1d4] sm:$0xf]
    %v162 = vld [vmem:[%s1 + $0x1d8] sm:$0xf]
    %v163 = vld [vmem:[%s1 + $0x1dc] sm:$0xf]
    %v164 = vld [vmem:[%s1 + $0x1e0] sm:$0xf]
    %v165 = vld [vmem:[%s1 + $0x1e4] sm:$0xf]
    %v166 = vld [vmem:[%s1 + $0x1e8] sm:$0xf]
    %v167 = vld [vmem:[%s1 + $0x1ec] sm:$0xf]
    %v168 = vld [vmem:[%s1 + $0x1f0] sm:$0xf]
    %v169 = vld [vmem:[%s1 + $0x1f4] sm:$0xf]
    %v170 = vld [vmem:[%s1 + $0x1f8] sm:$0xf]
    %v171 = vld [vmem:[%s1 + $0x1fc] sm:$0xf]
    %v172 = vld [vmem:[%s1 + $0x200] sm:$0xf]
    %v173 = vld [vmem:[%s1 + $0x204] sm:$0xf]
    %v174 = vld [vmem:[%s1 + $0x208] sm:$0xf]
    %v175 = vld [vmem:[%s1 + $0x20c] sm:$0xf]
    %v176 = vld [vmem:[%s1 + $0x210] sm:$0xf]
    %v177 = vld [vmem:[%s1 + $0x214] sm:$0xf]
    %v178 = vld [vmem:[%s1 + $0x218] sm:$0xf]
    %v179 = vld [vmem:[%s1 + $0x21c] sm:$0xf]
    %v180 = vld [vmem:[%s1 + $0x220] sm:$0xf]
    %v181 = vld [vmem:[%s1 + $0x224] sm:$0xf]
    %v182 = vld [vmem:[%s1 + $0x228] sm:$0xf]
    %v183 = vld [vmem:[%s1 + $0x22c] sm:$0xf]
    %v184 = vld [vmem:[%s1 + $0x230] sm:$0xf]
    %v185 = vld [vmem:[%s1 + $0x234] sm:$0xf]
    %v186 = vld [vmem:[%s1 + $0x238] sm:$0xf]
    %v187 = vld [vmem:[%s1 + $0x23c] sm:$0xf]
    %v188 = vld [vmem:[%s1 + $0x240] sm:$0xf]
    %v189 = vld [vmem:[%s1 + $0x244] sm:$0xf]
    %v190 = vld [vmem:[%s1 + $0x248] sm:$0xf]
    %v191 = vld [vmem:[%s1 + $0x24c] sm:$0xf]
    %v192 = vld [vmem:[%s1 + $0x250] sm:$0xf]
    %v193 = vld [vmem:[%s1 + $0x254] sm:$0xf]
    %v194 = vld [vmem:[%s1 + $0x258] sm:$0xf]
    %v195 = vld [vmem:[%s1 + $0x25c] sm:$0xf]
    %v196 = vld [vmem:[%s1 + $0x260] sm:$0xf]
    %v197 = vld [vmem:[%s1 + $0x264] sm:$0xf]
    %v198 = vld [vmem:[%s1 + $0x268] sm:$0xf]
    %v199 = vld [vmem:[%s1 + $0x26c] sm:$0xf]
    %v200 = vld [vmem:[%s1 + $0x270] sm:$0xf]
    %v201 = vld [vmem:[%s1 + $0x274] sm:$0xf]
    %v202 = vld [vmem:[%s1 + $0x278] sm:$0xf]
    %v203 = vld [vmem:[%s1 + $0x27c] sm:$0xf]
    %v204 = vld [vmem:[%s1 + $0x280] sm:$0xf]
    %v205 = vld [vmem:[%s1 + $0x284] sm:$0xf]
    %v206 = vld [vmem:[%s1 + $0x288] sm:$0xf]
    %v207 = vld [vmem:[%s1 + $0x28c] sm:$0xf]
    %v208 = vld [vmem:[%s1 + $0x290] sm:$0xf]
    %v209 = vld [vmem:[%s1 + $0x294] sm:$0xf]
    %v210 = vld [vmem:[%s1 + $0x298] sm:$0xf]
    %v211 = vld [vmem:[%s1 + $0x29c] sm:$0xf]
    %v212 = vld [vmem:[%s1 + $0x2a0] sm:$0xf]
    %v213 = vld [vmem:[%s1 + $0x2a4] sm:$0xf]
    %v214 = vld [vmem:[%s1 + $0x2a8] sm:$0xf]
    %v215 = vld [vmem:[%s1 + $0x2ac] sm:$0xf]
    %v216 = vld [vmem:[%s1 + $0x2b0] sm:$0xf]
    %v217 = vld [vmem:[%s1 + $0x2b4] sm:$0xf]
    %v218 = vld [vmem:[%s1 + $0x2b8] sm:$0xf]
    %v219 = vld [vmem:[%s1 + $0x2bc] sm:$0xf]
    %v220 = vld [vmem:[%s1 + $0x2c0] sm:$0xf]
    %v221 = vld [vmem:[%s1 + $0x2c4] sm:$0xf]
    %v222 = vld [vmem:[%s1 + $0x2c8] sm:$0xf]
    %v223 = vld [vmem:[%s1 + $0x2cc] sm:$0xf]
    %v224 = vld [vmem:[%s1 + $0x2d0] sm:$0xf]
    %v225 = vld [vmem:[%s1 + $0x2d4] sm:$0xf]
    %v226 = vld [vmem:[%s1 + $0x2d8] sm:$0xf]
    %v227 = vld [vmem:[%s1 + $0x2dc] sm:$0xf]
    %v228 = vld [vmem:[%s1 + $0x2e0] sm:$0xf]
    %v229 = vld [vmem:[%s1 + $0x2e4] sm:$0xf]
    %v230 = vld [vmem:[%s1 + $0x2e8] sm:$0xf]
    %v231 = vld [vmem:[%s1 + $0x2ec] sm:$0xf]
    %v232 = vld [vmem:[%s1 + $0x2f0] sm:$0xf]
    %v233 = vld [vmem:[%s1 + $0x2f4] sm:$0xf]
    %v234 = vld [vmem:[%s1 + $0x2f8] sm:$0xf]
    %v235 = vld [vmem:[%s1 + $0x2fc] sm:$0xf]
    %v236 = vld [vmem:[%s1 + $0x300] sm:$0xf]
    %v237 = vld [vmem:[%s1 + $0x304] sm:$0xf]
    %v238 = vld [vmem:[%s1 + $0x308] sm:$0xf]
    %v239 = vld [vmem:[%s1 + $0x30c] sm:$0xf]
    %v240 = vld [vmem:[%s1 + $0x310] sm:$0xf]
    %v241 = vld [vmem:[%s1 + $0x314] sm:$0xf]
    %v242 = vld [vmem:[%s1 + $0x318] sm:$0xf]
    %v243 = vld [vmem:[%s1 + $0x31c] sm:$0xf]
    %v244 = vld [vmem:[%s1 + $0x320] sm:$0xf]
    %v245 = vld [vmem:[%s1 + $0x324] sm:$0xf]
    %v246 = vld [vmem:[%s1 + $0x328] sm:$0xf]
    %v247 = vld [vmem:[%s1 + $0x32c] sm:$0xf]
    %v248 = vld [vmem:[%s1 + $0x330] sm:$0xf]
    %v249 = vld [vmem:[%s1 + $0x334] sm:$0xf]
    %v250 = vld [vmem:[%s1 + $0x338] sm:$0xf]
    %v251 = vld [vmem:[%s1 + $0x33c] sm:$0xf]
    %v252 = vld [vmem:[%s1 + $0x340] sm:$0xf]
    %v253 = vld [vmem:[%s1 + $0x344] sm:$0xf]
    %v254 = vld [vmem:[%s1 + $0x348] sm:$0xf]
    %v255 = vld [vmem:[%s1 + $0x34c] sm:$0xf]
    %v256 = vld [vmem:[%s1 + $0x350] sm:$0xf]
    %v257 = vld [vmem:[%s1 + $0x354] sm:$0xf]
    %v258 = vld [vmem:[%s1 + $0x358] sm:$0xf]
    %v259 = vld [vmem:[%s1 + $0x35c] sm:$0xf]
    %v260 = vld [vmem:[%s1 + $0x360] sm:$0xf]
    %v261 = vld [vmem:[%s1 + $0x364] sm:$0xf]
    %v262 = vld [vmem:[%s1 + $0x368] sm:$0xf]
    %v263 = vld [vmem:[%s1 + $0x36c] sm:$0xf]
    %v264 = vld [vmem:[%s1 + $0x370] sm:$0xf]
    %v265 = vld [vmem:[%s1 + $0x374] sm:$0xf]
    %v266 = vld [vmem:[%s1 + $0x378] sm:$0xf]
    %v267 = vld [vmem:[%s1 + $0x37c] sm:$0xf]
    %v268 = vld [vmem:[%s2] sm:$0x1]
    %v270 = vlaneseq
    %v271 = vshrl.u32 %v270, 7
    %v272 = vsub.s32 0, %v271
    %v273 = vrot.slane %v268, %v272
    %v499 = vunpack.c.l.b16 %v44
    %v500 = vunpack.c.l.b16 %v45
    %v501 = vunpack.c.l.b16 %v46
    %v502 = vunpack.c.l.b16 %v47
    %v503 = vunpack.c.l.b16 %v48
    %v504 = vunpack.c.l.b16 %v49
    %v505 = vunpack.c.l.b16 %v50
    %v506 = vunpack.c.l.b16 %v51
    %v507 = vunpack.c.l.b16 %v52
    %v508 = vunpack.c.l.b16 %v53
    %v509 = vunpack.c.l.b16 %v54
    %v510 = vunpack.c.l.b16 %v55
    %v511 = vunpack.c.l.b16 %v56
    %v512 = vunpack.c.l.b16 %v57
    %v513 = vunpack.c.l.b16 %v58
    %v514 = vunpack.c.l.b16 %v59
    %v515 = vunpack.c.l.b16 %v60
    %v516 = vunpack.c.l.b16 %v61
    %v517 = vunpack.c.l.b16 %v62
    %v518 = vunpack.c.l.b16 %v63
    %v519 = vunpack.c.l.b16 %v64
    %v520 = vunpack.c.l.b16 %v65
    %v521 = vunpack.c.l.b16 %v66
    %v522 = vunpack.c.l.b16 %v67
    %v523 = vunpack.c.l.b16 %v68
    %v524 = vunpack.c.l.b16 %v69
    %v525 = vunpack.c.l.b16 %v70
    %v526 = vunpack.c.l.b16 %v71
    %v527 = vunpack.c.l.b16 %v72
    %v528 = vunpack.c.l.b16 %v73
    %v529 = vunpack.c.l.b16 %v74
    %v530 = vunpack.c.l.b16 %v75
    %v531 = vunpack.c.l.b16 %v76
    %v532 = vunpack.c.l.b16 %v77
    %v533 = vunpack.c.l.b16 %v78
    %v534 = vunpack.c.l.b16 %v79
    %v535 = vunpack.c.l.b16 %v80
    %v536 = vunpack.c.l.b16 %v81
    %v537 = vunpack.c.l.b16 %v82
    %v538 = vunpack.c.l.b16 %v83
    %v539 = vunpack.c.l.b16 %v84
    %v540 = vunpack.c.l.b16 %v85
    %v541 = vunpack.c.l.b16 %v86
    %v542 = vunpack.c.l.b16 %v87
    %v543 = vunpack.c.l.b16 %v88
    %v544 = vunpack.c.l.b16 %v89
    %v545 = vunpack.c.l.b16 %v90
    %v546 = vunpack.c.l.b16 %v91
    %v547 = vunpack.c.l.b16 %v92
    %v548 = vunpack.c.l.b16 %v93
    %v549 = vunpack.c.l.b16 %v94
    %v550 = vunpack.c.l.b16 %v95
    %v551 = vunpack.c.l.b16 %v96
    %v552 = vunpack.c.l.b16 %v97
    %v553 = vunpack.c.l.b16 %v98
    %v554 = vunpack.c.l.b16 %v99
    %v555 = vunpack.c.l.b16 %v100
    %v556 = vunpack.c.l.b16 %v101
    %v557 = vunpack.c.l.b16 %v102
    %v558 = vunpack.c.l.b16 %v103
    %v559 = vunpack.c.l.b16 %v104
    %v560 = vunpack.c.l.b16 %v105
    %v561 = vunpack.c.l.b16 %v106
    %v562 = vunpack.c.l.b16 %v107
    %v563 = vunpack.c.l.b16 %v108
    %v564 = vunpack.c.l.b16 %v109
    %v565 = vunpack.c.l.b16 %v110
    %v566 = vunpack.c.l.b16 %v111
    %v567 = vunpack.c.l.b16 %v112
    %v568 = vunpack.c.l.b16 %v113
    %v569 = vunpack.c.l.b16 %v114
    %v570 = vunpack.c.l.b16 %v115
    %v571 = vunpack.c.l.b16 %v116
    %v572 = vunpack.c.l.b16 %v117
    %v573 = vunpack.c.l.b16 %v118
    %v574 = vunpack.c.l.b16 %v119
    %v575 = vunpack.c.l.b16 %v120
    %v576 = vunpack.c.l.b16 %v121
    %v577 = vunpack.c.l.b16 %v122
    %v578 = vunpack.c.l.b16 %v123
    %v579 = vunpack.c.l.b16 %v124
    %v580 = vunpack.c.l.b16 %v125
    %v581 = vunpack.c.l.b16 %v126
    %v582 = vunpack.c.l.b16 %v127
    %v583 = vunpack.c.l.b16 %v128
    %v584 = vunpack.c.l.b16 %v129
    %v585 = vunpack.c.l.b16 %v130
    %v586 = vunpack.c.l.b16 %v131
    %v587 = vunpack.c.l.b16 %v132
    %v588 = vunpack.c.l.b16 %v133
    %v589 = vunpack.c.l.b16 %v134
    %v590 = vunpack.c.l.b16 %v135
    %v591 = vunpack.c.l.b16 %v136
    %v592 = vunpack.c.l.b16 %v137
    %v593 = vunpack.c.l.b16 %v138
    %v594 = vunpack.c.l.b16 %v139
    %v595 = vunpack.c.l.b16 %v140
    %v596 = vunpack.c.l.b16 %v141
    %v597 = vunpack.c.l.b16 %v142
    %v598 = vunpack.c.l.b16 %v143
    %v599 = vunpack.c.l.b16 %v144
    %v600 = vunpack.c.l.b16 %v145
    %v601 = vunpack.c.l.b16 %v146
    %v602 = vunpack.c.l.b16 %v147
    %v603 = vunpack.c.l.b16 %v148
    %v604 = vunpack.c.l.b16 %v149
    %v605 = vunpack.c.l.b16 %v150
    %v606 = vunpack.c.l.b16 %v151
    %v607 = vunpack.c.l.b16 %v152
    %v608 = vunpack.c.l.b16 %v153
    %v609 = vunpack.c.l.b16 %v154
    %v610 = vunpack.c.l.b16 %v155
    %v611 = vunpack.c.l.b16 %v156
    %v612 = vunpack.c.l.b16 %v157
    %v613 = vunpack.c.l.b16 %v158
    %v614 = vunpack.c.l.b16 %v159
    %v615 = vunpack.c.l.b16 %v160
    %v616 = vunpack.c.l.b16 %v161
    %v617 = vunpack.c.l.b16 %v162
    %v618 = vunpack.c.l.b16 %v163
    %v619 = vunpack.c.l.b16 %v164
    %v620 = vunpack.c.l.b16 %v165
    %v621 = vunpack.c.l.b16 %v166
    %v622 = vunpack.c.l.b16 %v167
    %v623 = vunpack.c.l.b16 %v168
    %v624 = vunpack.c.l.b16 %v169
    %v625 = vunpack.c.l.b16 %v170
    %v626 = vunpack.c.l.b16 %v171
    %v627 = vunpack.c.l.b16 %v172
    %v628 = vunpack.c.l.b16 %v173
    %v629 = vunpack.c.l.b16 %v174
    %v630 = vunpack.c.l.b16 %v175
    %v631 = vunpack.c.l.b16 %v176
    %v632 = vunpack.c.l.b16 %v177
    %v633 = vunpack.c.l.b16 %v178
    %v634 = vunpack.c.l.b16 %v179
    %v635 = vunpack.c.l.b16 %v180
    %v636 = vunpack.c.l.b16 %v181
    %v637 = vunpack.c.l.b16 %v182
    %v638 = vunpack.c.l.b16 %v183
    %v639 = vunpack.c.l.b16 %v184
    %v640 = vunpack.c.l.b16 %v185
    %v641 = vunpack.c.l.b16 %v186
    %v642 = vunpack.c.l.b16 %v187
    %v643 = vunpack.c.l.b16 %v188
    %v644 = vunpack.c.l.b16 %v189
    %v645 = vunpack.c.l.b16 %v190
    %v646 = vunpack.c.l.b16 %v191
    %v647 = vunpack.c.l.b16 %v192
    %v648 = vunpack.c.l.b16 %v193
    %v649 = vunpack.c.l.b16 %v194
    %v650 = vunpack.c.l.b16 %v195
    %v651 = vunpack.c.l.b16 %v196
    %v652 = vunpack.c.l.b16 %v197
    %v653 = vunpack.c.l.b16 %v198
    %v654 = vunpack.c.l.b16 %v199
    %v655 = vunpack.c.l.b16 %v200
    %v656 = vunpack.c.l.b16 %v201
    %v657 = vunpack.c.l.b16 %v202
    %v658 = vunpack.c.l.b16 %v203
    %v659 = vunpack.c.l.b16 %v204
    %v660 = vunpack.c.l.b16 %v205
    %v661 = vunpack.c.l.b16 %v206
    %v662 = vunpack.c.l.b16 %v207
    %v663 = vunpack.c.l.b16 %v208
    %v664 = vunpack.c.l.b16 %v209
    %v665 = vunpack.c.l.b16 %v210
    %v666 = vunpack.c.l.b16 %v211
    %v667 = vunpack.c.l.b16 %v212
    %v668 = vunpack.c.l.b16 %v213
    %v669 = vunpack.c.l.b16 %v214
    %v670 = vunpack.c.l.b16 %v215
    %v671 = vunpack.c.l.b16 %v216
    %v672 = vunpack.c.l.b16 %v217
    %v673 = vunpack.c.l.b16 %v218
    %v674 = vunpack.c.l.b16 %v219
    %v675 = vunpack.c.l.b16 %v220
    %v676 = vunpack.c.l.b16 %v221
    %v677 = vunpack.c.l.b16 %v222
    %v678 = vunpack.c.l.b16 %v223
    %v679 = vunpack.c.l.b16 %v224
    %v680 = vunpack.c.l.b16 %v225
    %v681 = vunpack.c.l.b16 %v226
    %v682 = vunpack.c.l.b16 %v227
    %v683 = vunpack.c.l.b16 %v228
    %v684 = vunpack.c.l.b16 %v229
    %v685 = vunpack.c.l.b16 %v230
    %v686 = vunpack.c.l.b16 %v231
    %v687 = vunpack.c.l.b16 %v232
    %v688 = vunpack.c.l.b16 %v233
    %v689 = vunpack.c.l.b16 %v234
    %v690 = vunpack.c.l.b16 %v235
    %v691 = vunpack.c.l.b16 %v236
    %v692 = vunpack.c.l.b16 %v237
    %v693 = vunpack.c.l.b16 %v238
    %v694 = vunpack.c.l.b16 %v239
    %v695 = vunpack.c.l.b16 %v240
    %v696 = vunpack.c.l.b16 %v241
    %v697 = vunpack.c.l.b16 %v242
    %v698 = vunpack.c.l.b16 %v243
    %v699 = vunpack.c.l.b16 %v244
    %v700 = vunpack.c.l.b16 %v245
    %v701 = vunpack.c.l.b16 %v246
    %v702 = vunpack.c.l.b16 %v247
    %v703 = vunpack.c.l.b16 %v248
    %v704 = vunpack.c.l.b16 %v249
    %v705 = vunpack.c.l.b16 %v250
    %v706 = vunpack.c.l.b16 %v251
    %v707 = vunpack.c.l.b16 %v252
    %v708 = vunpack.c.l.b16 %v253
    %v709 = vunpack.c.l.b16 %v254
    %v710 = vunpack.c.l.b16 %v255
    %v711 = vunpack.c.l.b16 %v256
    %v712 = vunpack.c.l.b16 %v257
    %v713 = vunpack.c.l.b16 %v258
    %v714 = vunpack.c.l.b16 %v259
    %v715 = vunpack.c.l.b16 %v260
    %v716 = vunpack.c.l.b16 %v261
    %v717 = vunpack.c.l.b16 %v262
    %v718 = vunpack.c.l.b16 %v263
    %v719 = vunpack.c.l.b16 %v264
    %v720 = vunpack.c.l.b16 %v265
    %v721 = vunpack.c.l.b16 %v266
    %v722 = vunpack.c.l.b16 %v267
    %v723 = vpack.c.b16 %v500, %v499
    %v724 = vpack.c.b16 %v502, %v501
    %v725 = vpack.c.b16 %v504, %v503
    %v726 = vpack.c.b16 %v506, %v505
    %v727 = vpack.c.b16 %v508, %v507
    %v728 = vpack.c.b16 %v510, %v509
    %v729 = vpack.c.b16 %v512, %v511
    %v730 = vpack.c.b16 %v514, %v513
    %v731 = vpack.c.b16 %v516, %v515
    %v732 = vpack.c.b16 %v518, %v517
    %v733 = vpack.c.b16 %v520, %v519
    %v734 = vpack.c.b16 %v522, %v521
    %v735 = vpack.c.b16 %v524, %v523
    %v736 = vpack.c.b16 %v526, %v525
    %v737 = vpack.c.b16 %v528, %v527
    %v738 = vpack.c.b16 %v530, %v529
    %v739 = vpack.c.b16 %v532, %v531
    %v740 = vpack.c.b16 %v534, %v533
    %v741 = vpack.c.b16 %v536, %v535
    %v742 = vpack.c.b16 %v538, %v537
    %v743 = vpack.c.b16 %v540, %v539
    %v744 = vpack.c.b16 %v542, %v541
    %v745 = vpack.c.b16 %v544, %v543
    %v746 = vpack.c.b16 %v546, %v545
    %v747 = vpack.c.b16 %v548, %v547
    %v748 = vpack.c.b16 %v550, %v549
    %v749 = vpack.c.b16 %v552, %v551
    %v750 = vpack.c.b16 %v554, %v553
    %v751 = vpack.c.b16 %v556, %v555
    %v752 = vpack.c.b16 %v558, %v557
    %v753 = vpack.c.b16 %v560, %v559
    %v754 = vpack.c.b16 %v562, %v561
    %v755 = vpack.c.b16 %v564, %v563
    %v756 = vpack.c.b16 %v566, %v565
    %v757 = vpack.c.b16 %v568, %v567
    %v758 = vpack.c.b16 %v570, %v569
    %v759 = vpack.c.b16 %v572, %v571
    %v760 = vpack.c.b16 %v574, %v573
    %v761 = vpack.c.b16 %v576, %v575
    %v762 = vpack.c.b16 %v578, %v577
    %v763 = vpack.c.b16 %v580, %v579
    %v764 = vpack.c.b16 %v582, %v581
    %v765 = vpack.c.b16 %v584, %v583
    %v766 = vpack.c.b16 %v586, %v585
    %v767 = vpack.c.b16 %v588, %v587
    %v768 = vpack.c.b16 %v590, %v589
    %v769 = vpack.c.b16 %v592, %v591
    %v770 = vpack.c.b16 %v594, %v593
    %v771 = vpack.c.b16 %v596, %v595
    %v772 = vpack.c.b16 %v598, %v597
    %v773 = vpack.c.b16 %v600, %v599
    %v774 = vpack.c.b16 %v602, %v601
    %v775 = vpack.c.b16 %v604, %v603
    %v776 = vpack.c.b16 %v606, %v605
    %v777 = vpack.c.b16 %v608, %v607
    %v778 = vpack.c.b16 %v610, %v609
    %v779 = vpack.c.b16 %v612, %v611
    %v780 = vpack.c.b16 %v614, %v613
    %v781 = vpack.c.b16 %v616, %v615
    %v782 = vpack.c.b16 %v618, %v617
    %v783 = vpack.c.b16 %v620, %v619
    %v784 = vpack.c.b16 %v622, %v621
    %v785 = vpack.c.b16 %v624, %v623
    %v786 = vpack.c.b16 %v626, %v625
    %v787 = vpack.c.b16 %v628, %v627
    %v788 = vpack.c.b16 %v630, %v629
    %v789 = vpack.c.b16 %v632, %v631
    %v790 = vpack.c.b16 %v634, %v633
    %v791 = vpack.c.b16 %v636, %v635
    %v792 = vpack.c.b16 %v638, %v637
    %v793 = vpack.c.b16 %v640, %v639
    %v794 = vpack.c.b16 %v642, %v641
    %v795 = vpack.c.b16 %v644, %v643
    %v796 = vpack.c.b16 %v646, %v645
    %v797 = vpack.c.b16 %v648, %v647
    %v798 = vpack.c.b16 %v650, %v649
    %v799 = vpack.c.b16 %v652, %v651
    %v800 = vpack.c.b16 %v654, %v653
    %v801 = vpack.c.b16 %v656, %v655
    %v802 = vpack.c.b16 %v658, %v657
    %v803 = vpack.c.b16 %v660, %v659
    %v804 = vpack.c.b16 %v662, %v661
    %v805 = vpack.c.b16 %v664, %v663
    %v806 = vpack.c.b16 %v666, %v665
    %v807 = vpack.c.b16 %v668, %v667
    %v808 = vpack.c.b16 %v670, %v669
    %v809 = vpack.c.b16 %v672, %v671
    %v810 = vpack.c.b16 %v674, %v673
    %v811 = vpack.c.b16 %v676, %v675
    %v812 = vpack.c.b16 %v678, %v677
    %v813 = vpack.c.b16 %v680, %v679
    %v814 = vpack.c.b16 %v682, %v681
    %v815 = vpack.c.b16 %v684, %v683
    %v816 = vpack.c.b16 %v686, %v685
    %v817 = vpack.c.b16 %v688, %v687
    %v818 = vpack.c.b16 %v690, %v689
    %v819 = vpack.c.b16 %v692, %v691
    %v820 = vpack.c.b16 %v694, %v693
    %v821 = vpack.c.b16 %v696, %v695
    %v822 = vpack.c.b16 %v698, %v697
    %v823 = vpack.c.b16 %v700, %v699
    %v824 = vpack.c.b16 %v702, %v701
    %v825 = vpack.c.b16 %v704, %v703
    %v826 = vpack.c.b16 %v706, %v705
    %v827 = vpack.c.b16 %v708, %v707
    %v828 = vpack.c.b16 %v710, %v709
    %v829 = vpack.c.b16 %v712, %v711
    %v830 = vpack.c.b16 %v714, %v713
    %v831 = vpack.c.b16 %v716, %v715
    %v832 = vpack.c.b16 %v718, %v717
    %v833 = vpack.c.b16 %v720, %v719
    %v834 = vpack.c.b16 %v722, %v721
    %947 = vmatprep.subr.bf16.mxu0 0
    %948 = vmatpush1.bf16.msra.mxu0 %v730
    %949 = vmatprep.subr.bf16.mxu0 0
    %950 = vmatpush1.bf16.msra.mxu0 %v729
    %951 = vmatprep.subr.bf16.mxu0 0
    %952 = vmatpush1.bf16.msra.mxu0 %v728
    %953 = vmatprep.subr.bf16.mxu0 0
    %954 = vmatpush1.bf16.msra.mxu0 %v727
    %955 = vmatprep.subr.bf16.mxu0 0
    %956 = vmatpush1.bf16.msra.mxu0 %v726
    %957 = vmatprep.subr.bf16.mxu0 0
    %958 = vmatpush1.bf16.msra.mxu0 %v725
    %959 = vmatprep.subr.bf16.mxu0 0
    %960 = vmatpush1.bf16.msra.mxu0 %v724
    %961 = vmatprep.subr.bf16.mxu0 0
    %962 = vmatpush1.bf16.msra.mxu0 %v723
    %963 = vmatprep.subr.bf16.mxu0 0
    %964 = vmatpush2.bf16.msra.mxu0 %v738
    %965 = vmatprep.subr.bf16.mxu0 0
    %966 = vmatpush2.bf16.msra.mxu0 %v737
    %967 = vmatprep.subr.bf16.mxu0 0
    %968 = vmatpush2.bf16.msra.mxu0 %v736
    %969 = vmatprep.subr.bf16.mxu0 0
    %970 = vmatpush2.bf16.msra.mxu0 %v735
    %971 = vmatprep.subr.bf16.mxu0 0
    %972 = vmatpush2.bf16.msra.mxu0 %v734
    %973 = vmatprep.subr.bf16.mxu0 0
    %974 = vmatpush2.bf16.msra.mxu0 %v733
    %975 = vmatprep.subr.bf16.mxu0 0
    %976 = vmatpush2.bf16.msra.mxu0 %v732
    %977 = vmatprep.subr.bf16.mxu0 0
    %978 = vmatpush2.bf16.msra.mxu0 %v731
    %979 = vmatprep.mubr.bf16.mxu0 %v31
    %980 = vmatmul.mubr.bf16.gmra.mxu0 %v30
    %v981 = vpop.f32.mrf.mxu0
    %v982 = vadd.f32 %v273, %v981
    %v983 = vpop.f32.mrf.mxu0
    %v984 = vpop.f32.mrf.mxu0
    %v985 = vpop.f32.mrf.mxu0
    %986 = vdwg.mxu0
    %987 = vmatprep.subr.bf16.mxu0 0
    %988 = vmatpush1.bf16.msra.mxu0 %v746
    %989 = vmatprep.subr.bf16.mxu0 0
    %990 = vmatpush1.bf16.msra.mxu0 %v745
    %991 = vmatprep.subr.bf16.mxu0 0
    %992 = vmatpush1.bf16.msra.mxu0 %v744
    %993 = vmatprep.subr.bf16.mxu0 0
    %994 = vmatpush1.bf16.msra.mxu0 %v743
    %995 = vmatprep.subr.bf16.mxu0 0
    %996 = vmatpush1.bf16.msra.mxu0 %v742
    %997 = vmatprep.subr.bf16.mxu0 0
    %998 = vmatpush1.bf16.msra.mxu0 %v741
    %999 = vmatprep.subr.bf16.mxu0 0
    %1000 = vmatpush1.bf16.msra.mxu0 %v740
    %1001 = vmatprep.subr.bf16.mxu0 0
    %1002 = vmatpush1.bf16.msra.mxu0 %v739
    %1003 = vmatprep.subr.bf16.mxu0 0
    %1004 = vmatpush2.bf16.msra.mxu0 %v754
    %1005 = vmatprep.subr.bf16.mxu0 0
    %1006 = vmatpush2.bf16.msra.mxu0 %v753
    %1007 = vmatprep.subr.bf16.mxu0 0
    %1008 = vmatpush2.bf16.msra.mxu0 %v752
    %1009 = vmatprep.subr.bf16.mxu0 0
    %1010 = vmatpush2.bf16.msra.mxu0 %v751
    %1011 = vmatprep.subr.bf16.mxu0 0
    %1012 = vmatpush2.bf16.msra.mxu0 %v750
    %1013 = vmatprep.subr.bf16.mxu0 0
    %1014 = vmatpush2.bf16.msra.mxu0 %v749
    %1015 = vmatprep.subr.bf16.mxu0 0
    %1016 = vmatpush2.bf16.msra.mxu0 %v748
    %1017 = vmatprep.subr.bf16.mxu0 0
    %1018 = vmatpush2.bf16.msra.mxu0 %v747
    %1019 = vmatprep.mubr.bf16.mxu0 %v33
    %1020 = vmatmul.mubr.bf16.gmra.mxu0 %v32
    %v1021 = vpop.f32.mrf.mxu0
    %v1022 = vadd.f32 %v982, %v1021
    %v1023 = vpop.f32.mrf.mxu0
    %v1024 = vpop.f32.mrf.mxu0
    %v1025 = vpop.f32.mrf.mxu0
    %1026 = vdwg.mxu0
    %1027 = vmatprep.subr.bf16.mxu0 0
    %1028 = vmatpush1.bf16.msra.mxu0 %v762
    %1029 = vmatprep.subr.bf16.mxu0 0
    %1030 = vmatpush1.bf16.msra.mxu0 %v761
    %1031 = vmatprep.subr.bf16.mxu0 0
    %1032 = vmatpush1.bf16.msra.mxu0 %v760
    %1033 = vmatprep.subr.bf16.mxu0 0
    %1034 = vmatpush1.bf16.msra.mxu0 %v759
    %1035 = vmatprep.subr.bf16.mxu0 0
    %1036 = vmatpush1.bf16.msra.mxu0 %v758
    %1037 = vmatprep.subr.bf16.mxu0 0
    %1038 = vmatpush1.bf16.msra.mxu0 %v757
    %1039 = vmatprep.subr.bf16.mxu0 0
    %1040 = vmatpush1.bf16.msra.mxu0 %v756
    %1041 = vmatprep.subr.bf16.mxu0 0
    %1042 = vmatpush1.bf16.msra.mxu0 %v755
    %1043 = vmatprep.subr.bf16.mxu0 0
    %1044 = vmatpush2.bf16.msra.mxu0 %v770
    %1045 = vmatprep.subr.bf16.mxu0 0
    %1046 = vmatpush2.bf16.msra.mxu0 %v769
    %1047 = vmatprep.subr.bf16.mxu0 0
    %1048 = vmatpush2.bf16.msra.mxu0 %v768
    %1049 = vmatprep.subr.bf16.mxu0 0
    %1050 = vmatpush2.bf16.msra.mxu0 %v767
    %1051 = vmatprep.subr.bf16.mxu0 0
    %1052 = vmatpush2.bf16.msra.mxu0 %v766
    %1053 = vmatprep.subr.bf16.mxu0 0
    %1054 = vmatpush2.bf16.msra.mxu0 %v765
    %1055 = vmatprep.subr.bf16.mxu0 0
    %1056 = vmatpush2.bf16.msra.mxu0 %v764
    %1057 = vmatprep.subr.bf16.mxu0 0
    %1058 = vmatpush2.bf16.msra.mxu0 %v763
    %1059 = vmatprep.mubr.bf16.mxu0 %v35
    %1060 = vmatmul.mubr.bf16.gmra.mxu0 %v34
    %v1061 = vpop.f32.mrf.mxu0
    %v1062 = vadd.f32 %v1022, %v1061
    %v1063 = vpop.f32.mrf.mxu0
    %v1064 = vpop.f32.mrf.mxu0
    %v1065 = vpop.f32.mrf.mxu0
    %1066 = vdwg.mxu0
    %1067 = vmatprep.subr.bf16.mxu0 0
    %1068 = vmatpush1.bf16.msra.mxu0 %v778
    %1069 = vmatprep.subr.bf16.mxu0 0
    %1070 = vmatpush1.bf16.msra.mxu0 %v777
    %1071 = vmatprep.subr.bf16.mxu0 0
    %1072 = vmatpush1.bf16.msra.mxu0 %v776
    %1073 = vmatprep.subr.bf16.mxu0 0
    %1074 = vmatpush1.bf16.msra.mxu0 %v775
    %1075 = vmatprep.subr.bf16.mxu0 0
    %1076 = vmatpush1.bf16.msra.mxu0 %v774
    %1077 = vmatprep.subr.bf16.mxu0 0
    %1078 = vmatpush1.bf16.msra.mxu0 %v773
    %1079 = vmatprep.subr.bf16.mxu0 0
    %1080 = vmatpush1.bf16.msra.mxu0 %v772
    %1081 = vmatprep.subr.bf16.mxu0 0
    %1082 = vmatpush1.bf16.msra.mxu0 %v771
    %1083 = vmatprep.subr.bf16.mxu0 0
    %1084 = vmatpush2.bf16.msra.mxu0 %v786
    %1085 = vmatprep.subr.bf16.mxu0 0
    %1086 = vmatpush2.bf16.msra.mxu0 %v785
    %1087 = vmatprep.subr.bf16.mxu0 0
    %1088 = vmatpush2.bf16.msra.mxu0 %v784
    %1089 = vmatprep.subr.bf16.mxu0 0
    %1090 = vmatpush2.bf16.msra.mxu0 %v783
    %1091 = vmatprep.subr.bf16.mxu0 0
    %1092 = vmatpush2.bf16.msra.mxu0 %v782
    %1093 = vmatprep.subr.bf16.mxu0 0
    %1094 = vmatpush2.bf16.msra.mxu0 %v781
    %1095 = vmatprep.subr.bf16.mxu0 0
    %1096 = vmatpush2.bf16.msra.mxu0 %v780
    %1097 = vmatprep.subr.bf16.mxu0 0
    %1098 = vmatpush2.bf16.msra.mxu0 %v779
    %1099 = vmatprep.mubr.bf16.mxu0 %v37
    %1100 = vmatmul.mubr.bf16.gmra.mxu0 %v36
    %v1101 = vpop.f32.mrf.mxu0
    %v1102 = vadd.f32 %v1062, %v1101
    %v1103 = vpop.f32.mrf.mxu0
    %v1104 = vpop.f32.mrf.mxu0
    %v1105 = vpop.f32.mrf.mxu0
    %1106 = vdwg.mxu0
    %1107 = vmatprep.subr.bf16.mxu0 0
    %1108 = vmatpush1.bf16.msra.mxu0 %v794
    %1109 = vmatprep.subr.bf16.mxu0 0
    %1110 = vmatpush1.bf16.msra.mxu0 %v793
    %1111 = vmatprep.subr.bf16.mxu0 0
    %1112 = vmatpush1.bf16.msra.mxu0 %v792
    %1113 = vmatprep.subr.bf16.mxu0 0
    %1114 = vmatpush1.bf16.msra.mxu0 %v791
    %1115 = vmatprep.subr.bf16.mxu0 0
    %1116 = vmatpush1.bf16.msra.mxu0 %v790
    %1117 = vmatprep.subr.bf16.mxu0 0
    %1118 = vmatpush1.bf16.msra.mxu0 %v789
    %1119 = vmatprep.subr.bf16.mxu0 0
    %1120 = vmatpush1.bf16.msra.mxu0 %v788
    %1121 = vmatprep.subr.bf16.mxu0 0
    %1122 = vmatpush1.bf16.msra.mxu0 %v787
    %1123 = vmatprep.subr.bf16.mxu0 0
    %1124 = vmatpush2.bf16.msra.mxu0 %v802
    %1125 = vmatprep.subr.bf16.mxu0 0
    %1126 = vmatpush2.bf16.msra.mxu0 %v801
    %1127 = vmatprep.subr.bf16.mxu0 0
    %1128 = vmatpush2.bf16.msra.mxu0 %v800
    %1129 = vmatprep.subr.bf16.mxu0 0
    %1130 = vmatpush2.bf16.msra.mxu0 %v799
    %1131 = vmatprep.subr.bf16.mxu0 0
    %1132 = vmatpush2.bf16.msra.mxu0 %v798
    %1133 = vmatprep.subr.bf16.mxu0 0
    %1134 = vmatpush2.bf16.msra.mxu0 %v797
    %1135 = vmatprep.subr.bf16.mxu0 0
    %1136 = vmatpush2.bf16.msra.mxu0 %v796
    %1137 = vmatprep.subr.bf16.mxu0 0
    %1138 = vmatpush2.bf16.msra.mxu0 %v795
    %1139 = vmatprep.mubr.bf16.mxu0 %v39
    %1140 = vmatmul.mubr.bf16.gmra.mxu0 %v38
    %v1141 = vpop.f32.mrf.mxu0
    %v1142 = vadd.f32 %v1102, %v1141
    %v1143 = vpop.f32.mrf.mxu0
    %v1144 = vpop.f32.mrf.mxu0
    %v1145 = vpop.f32.mrf.mxu0
    %1146 = vdwg.mxu0
    %1147 = vmatprep.subr.bf16.mxu0 0
    %1148 = vmatpush1.bf16.msra.mxu0 %v810
    %1149 = vmatprep.subr.bf16.mxu0 0
    %1150 = vmatpush1.bf16.msra.mxu0 %v809
    %1151 = vmatprep.subr.bf16.mxu0 0
    %1152 = vmatpush1.bf16.msra.mxu0 %v808
    %1153 = vmatprep.subr.bf16.mxu0 0
    %1154 = vmatpush1.bf16.msra.mxu0 %v807
    %1155 = vmatprep.subr.bf16.mxu0 0
    %1156 = vmatpush1.bf16.msra.mxu0 %v806
    %1157 = vmatprep.subr.bf16.mxu0 0
    %1158 = vmatpush1.bf16.msra.mxu0 %v805
    %1159 = vmatprep.subr.bf16.mxu0 0
    %1160 = vmatpush1.bf16.msra.mxu0 %v804
    %1161 = vmatprep.subr.bf16.mxu0 0
    %1162 = vmatpush1.bf16.msra.mxu0 %v803
    %1163 = vmatprep.subr.bf16.mxu0 0
    %1164 = vmatpush2.bf16.msra.mxu0 %v818
    %1165 = vmatprep.subr.bf16.mxu0 0
    %1166 = vmatpush2.bf16.msra.mxu0 %v817
    %1167 = vmatprep.subr.bf16.mxu0 0
    %1168 = vmatpush2.bf16.msra.mxu0 %v816
    %1169 = vmatprep.subr.bf16.mxu0 0
    %1170 = vmatpush2.bf16.msra.mxu0 %v815
    %1171 = vmatprep.subr.bf16.mxu0 0
    %1172 = vmatpush2.bf16.msra.mxu0 %v814
    %1173 = vmatprep.subr.bf16.mxu0 0
    %1174 = vmatpush2.bf16.msra.mxu0 %v813
    %1175 = vmatprep.subr.bf16.mxu0 0
    %1176 = vmatpush2.bf16.msra.mxu0 %v812
    %1177 = vmatprep.subr.bf16.mxu0 0
    %1178 = vmatpush2.bf16.msra.mxu0 %v811
    %1179 = vmatprep.mubr.bf16.mxu0 %v41
    %1180 = vmatmul.mubr.bf16.gmra.mxu0 %v40
    %v1181 = vpop.f32.mrf.mxu0
    %v1182 = vadd.f32 %v1142, %v1181
    %v1183 = vpop.f32.mrf.mxu0
    %v1184 = vpop.f32.mrf.mxu0
    %v1185 = vpop.f32.mrf.mxu0
    %1186 = vdwg.mxu0
    %1187 = vmatprep.subr.bf16.mxu0 0
    %1188 = vmatpush1.bf16.msra.mxu0 %v826
    %1189 = vmatprep.subr.bf16.mxu0 0
    %1190 = vmatpush1.bf16.msra.mxu0 %v825
    %1191 = vmatprep.subr.bf16.mxu0 0
    %1192 = vmatpush1.bf16.msra.mxu0 %v824
    %1193 = vmatprep.subr.bf16.mxu0 0
    %1194 = vmatpush1.bf16.msra.mxu0 %v823
    %1195 = vmatprep.subr.bf16.mxu0 0
    %1196 = vmatpush1.bf16.msra.mxu0 %v822
    %1197 = vmatprep.subr.bf16.mxu0 0
    %1198 = vmatpush1.bf16.msra.mxu0 %v821
    %1199 = vmatprep.subr.bf16.mxu0 0
    %1200 = vmatpush1.bf16.msra.mxu0 %v820
    %1201 = vmatprep.subr.bf16.mxu0 0
    %1202 = vmatpush1.bf16.msra.mxu0 %v819
    %1203 = vmatprep.subr.bf16.mxu0 0
    %1204 = vmatpush2.bf16.msra.mxu0 %v834
    %1205 = vmatprep.subr.bf16.mxu0 0
    %1206 = vmatpush2.bf16.msra.mxu0 %v833
    %1207 = vmatprep.subr.bf16.mxu0 0
    %1208 = vmatpush2.bf16.msra.mxu0 %v832
    %1209 = vmatprep.subr.bf16.mxu0 0
    %1210 = vmatpush2.bf16.msra.mxu0 %v831
    %1211 = vmatprep.subr.bf16.mxu0 0
    %1212 = vmatpush2.bf16.msra.mxu0 %v830
    %1213 = vmatprep.subr.bf16.mxu0 0
    %1214 = vmatpush2.bf16.msra.mxu0 %v829
    %1215 = vmatprep.subr.bf16.mxu0 0
    %1216 = vmatpush2.bf16.msra.mxu0 %v828
    %1217 = vmatprep.subr.bf16.mxu0 0
    %1218 = vmatpush2.bf16.msra.mxu0 %v827
    %1219 = vmatprep.mubr.bf16.mxu0 %v43
    %1220 = vmatmul.mubr.bf16.gmra.mxu0 %v42
    %v1221 = vpop.f32.mrf.mxu0
    %v1222 = vadd.f32 %v1182, %v1221
    %v1223 = vpop.f32.mrf.mxu0
    %v1224 = vpop.f32.mrf.mxu0
    %v1225 = vpop.f32.mrf.mxu0
    %1226 = vdwg.mxu0
    %vm1227 = vcmask 326656
    %1228 = vst.msk [vmem:[#allocation2] sm:$0xff] %vm1227, %v1222
    // Predicated region
    $region14: #{efficient_baseline_head.1} parent=1 // pred_check
      _
    $region15: #{efficient_baseline_head.1} parent=1 // pred_check_branch
      %1230 = sbr.rel (0) target = $region17
    $region16: #{efficient_baseline_head.1} parent=1 // pred_region
      %s1232 = ssub.s32 128, 128
      %1233 = vsyncadd [#allocation3], %s1232
      %s1235 = sshll.u32 [#allocation2], 4
      %s1236 = int_to_ptr.vmem [resolvable:$true] %s1235
      %1238 = dma.vmem_to_hbm [thread:$0]  %s1236, 128, %s3, [#allocation3]
    $region17: #{efficient_baseline_head.1} parent=1 // pred_fallthru
      _
    // Predicated region
    $region18: #{efficient_baseline_head.1} parent=1 // pred_check
      _
    $region19: #{efficient_baseline_head.1} parent=1 // pred_check_branch
      %1240 = sbr.rel (0) target = $region21
    $region20: #{efficient_baseline_head.1} parent=1 // pred_region
      %1241 = dma.done [#allocation3], 128
    $region21: #{efficient_baseline_head.1} parent=1 // pred_fallthru
      _
    %1242 = vsyncpa [#allocation3], 1

</llo_original>
